<compile_context>
chip_gen: v7x
topology: tpu7x:2x2x1
jax: 0.10.0
libtpu: 0.0.40
codegen_flags: <defaults>
</compile_context>

<pallas_src>
import functools

import numpy as np
import jax
import jax.numpy as jnp
from jax.experimental import pallas as pl
from jax.experimental.pallas import tpu as pltpu


# ----------------------------------------------------------------------------
# Kernels
# ----------------------------------------------------------------------------

def _mbstd_scalar_kernel(x_ref, o_ref, *, alpha, n_total):
    """x_ref: (B, TN) f32 column tile.  o_ref: (1,1) f32 resident accumulator."""
    i = pl.program_id(0)

    @pl.when(i == 0)
    def _():
        o_ref[...] = jnp.zeros_like(o_ref)

    x = x_ref[...]                                            # (B, TN)
    mu = jnp.mean(x, axis=0, keepdims=True)                   # mean over batch
    var = jnp.mean((x - mu) ** 2, axis=0, keepdims=True)      # biased var, (1, TN)
    std = jnp.sqrt(var + alpha)                               # (1, TN)
    o_ref[...] += jnp.sum(std, keepdims=True)                 # running sum -> (1,1)

    @pl.when(i == pl.num_programs(0) - 1)
    def _():
        o_ref[...] = o_ref[...] * (1.0 / n_total)             # mean over all C*H*W


def _concat_std_kernel(x_ref, std_ref, o_ref):
    """x_ref: (1, C, HW); std_ref: (1,1) f32 in SMEM; o_ref: (1, C+1, HW)."""
    c = x_ref.shape[1]
    hw = x_ref.shape[2]
    s = std_ref[0, 0]
    o_ref[:, :c, :] = x_ref[...]
    o_ref[:, c:, :] = jnp.full((1, 1, hw), s, o_ref.dtype)


# ----------------------------------------------------------------------------
# pallas_call wrappers
# ----------------------------------------------------------------------------

def _pick_col_tile(n_cols, batch, max_tile_bytes):
    """Column-tile width: multiple of 128 dividing n_cols, (B,TN) f32 block
    under max_tile_bytes; falls back to the full extent (always legal)."""
    if n_cols % 128 != 0:
        return n_cols
    limit = max(128, ((max_tile_bytes // (4 * batch)) // 128) * 128)
    t = min(n_cols, limit)
    t -= t % 128
    while t > 128 and n_cols % t != 0:
        t -= 128
    return t if n_cols % t == 0 else n_cols


def _minibatch_std_scalar(x2d, alpha, max_tile_bytes):
    b, n = x2d.shape
    tn = _pick_col_tile(n, b, max_tile_bytes)
    return pl.pallas_call(
        functools.partial(_mbstd_scalar_kernel, alpha=alpha, n_total=n),
        out_shape=jax.ShapeDtypeStruct((1, 1), jnp.float32),
        grid=(n // tn,),
        in_specs=[pl.BlockSpec((b, tn), lambda i: (0, i))],
        out_specs=pl.BlockSpec((1, 1), lambda i: (0, 0)),
        compiler_params=pltpu.CompilerParams(
            dimension_semantics=("arbitrary",)),
    )(x2d)


def _concat_std_map(x3d, std11):
    b, c, hw = x3d.shape
    return pl.pallas_call(
        _concat_std_kernel,
        out_shape=jax.ShapeDtypeStruct((b, c + 1, hw), x3d.dtype),
        grid=(b,),
        in_specs=[
            pl.BlockSpec((1, c, hw), lambda i: (i, 0, 0)),
            pl.BlockSpec(memory_space=pltpu.MemorySpace.SMEM),
        ],
        out_specs=pl.BlockSpec((1, c + 1, hw), lambda i: (i, 0, 0)),
        compiler_params=pltpu.CompilerParams(
            dimension_semantics=("parallel",)),
    )(x3d, std11)


def minibatch_std_dev(x, alpha=1e-8, *, max_tile_bytes=2 << 20):
    """MinibatchStdDev.forward: returns x with an appended constant std channel.

    x: (B, C, H, W) f32  ->  (B, C+1, H, W) f32
    """
    b, c, h, w = x.shape
    xf = x.astype(jnp.float32)
    std = _minibatch_std_scalar(xf.reshape(b, c * h * w), alpha, max_tile_bytes)
    out3d = _concat_std_map(x.reshape(b, c, h * w), std)      # fused concat
    return out3d.reshape(b, c + 1, h, w)


# ----------------------------------------------------------------------------
# Pure-JAX reference (validation only)
# ----------------------------------------------------------------------------

def reference(x, alpha=1e-8):
    b, _, h, w = x.shape
    mu = jnp.mean(x, axis=0, keepdims=True)
    std = jnp.sqrt(jnp.mean((x - mu) ** 2, axis=0) + alpha)   # (C, H, W)
    s = jnp.mean(std)
    smap = jnp.broadcast_to(s.reshape(1, 1, 1, 1), (b, 1, h, w)).astype(x.dtype)
    return jnp.concatenate([x, smap], axis=1)


# ----------------------------------------------------------------------------

if __name__ == "__main__":
    key = jax.random.PRNGKey(0)
    k1, k2 = jax.random.split(key)

    # Small shape consistent with the module: (B, C, H, W) = (2, 4, 16, 16)
    x = jax.random.normal(k1, (2, 4, 16, 16), jnp.float32)
    out = jax.jit(minibatch_std_dev)(x)
    out = jax.block_until_ready(out)
    ref = reference(x)
    assert out.shape == (2, 5, 16, 16), out.shape
    np.testing.assert_allclose(np.asarray(out), np.asarray(ref),
                               rtol=1e-5, atol=1e-5)

    # Second check exercising the tiled (multi-step) reduction path.
    x2 = jax.random.normal(k2, (4, 8, 32, 32), jnp.float32)
    out2 = jax.jit(lambda t: minibatch_std_dev(t, max_tile_bytes=32 * 1024))(x2)
    out2 = jax.block_until_ready(out2)
    ref2 = reference(x2)
    assert out2.shape == (4, 9, 32, 32), out2.shape
    np.testing.assert_allclose(np.asarray(out2), np.asarray(ref2),
                               rtol=1e-5, atol=1e-5)

    print("KERNEL_OK")
</pallas_src>

<mosaic_0001>
module attributes {stable_mosaic.version = 11 : i64} {
  func.func @_concat_std_kernel(%arg0: i32, %arg1: memref<1x4x256xf32, #tpu.memory_space<vmem>>, %arg2: memref<1x1xf32, #tpu.memory_space<smem>>, %arg3: memref<1x5x256xf32, #tpu.memory_space<vmem>>) attributes {dimension_semantics = [#tpu.dimension_semantics<parallel>], iteration_bounds = array<i64: 2>, scalar_prefetch = 0 : i64, scratch_operands = 0 : i64, tpu.core_type = #tpu.core_type<tc>, window_params = [{transform_indices = @transform_0, window_bounds = array<i64: 1, 4, 256>}, {transform_indices = @transform_1, window_bounds = array<i64: 1, 1>}, {transform_indices = @transform_2, window_bounds = array<i64: 1, 5, 256>}]} {
    %c0 = arith.constant 0 : index
    %c0_0 = arith.constant 0 : index
    %0 = memref.load %arg2[%c0, %c0_0] : memref<1x1xf32, #tpu.memory_space<smem>>
    %c0_1 = arith.constant 0 : index
    %c0_2 = arith.constant 0 : index
    %c0_3 = arith.constant 0 : index
    %1 = vector.load %arg1[%c0_1, %c0_2, %c0_3] : memref<1x4x256xf32, #tpu.memory_space<vmem>>, vector<1x4x256xf32>
    %c0_4 = arith.constant 0 : index
    %c0_5 = arith.constant 0 : index
    %c0_6 = arith.constant 0 : index
    %2 = vector.load %arg3[%c0_4, %c0_5, %c0_6] : memref<1x5x256xf32, #tpu.memory_space<vmem>>, vector<1x4x256xf32>
    tpu.vector_store %arg3[%c0_4, %c0_5, %c0_6], %1 {strides = array<i32>} : memref<1x5x256xf32, #tpu.memory_space<vmem>>, vector<1x4x256xf32>,
    %3 = vector.broadcast %0 : f32 to vector<1x1x256xf32>
    %c0_7 = arith.constant 0 : index
    %c4 = arith.constant 4 : index
    %c0_8 = arith.constant 0 : index
    %4 = vector.load %arg3[%c0_7, %c4, %c0_8] : memref<1x5x256xf32, #tpu.memory_space<vmem>>, vector<1x1x256xf32>
    tpu.vector_store %arg3[%c0_7, %c4, %c0_8], %3 {strides = array<i32>} : memref<1x5x256xf32, #tpu.memory_space<vmem>>, vector<1x1x256xf32>,
    return
  }
  func.func @transform_0(%arg0: i32) -> (i32, i32, i32) {
    %c0_i32 = arith.constant 0 : i32
    %c0_i32_0 = arith.constant 0 : i32
    %c0_i32_1 = arith.constant 0 : i32
    return %arg0, %c0_i32, %c0_i32_0 : i32, i32, i32
  }
  func.func @transform_1(%arg0: i32) -> (i32, i32) {
    %c0_i32 = arith.constant 0 : i32
    %c0_i32_0 = arith.constant 0 : i32
    %c0_i32_1 = arith.constant 0 : i32
    return %c0_i32, %c0_i32_0 : i32, i32
  }
  func.func @transform_2(%arg0: i32) -> (i32, i32, i32) {
    %c0_i32 = arith.constant 0 : i32
    %c0_i32_0 = arith.constant 0 : i32
    %c0_i32_1 = arith.constant 0 : i32
    return %arg0, %c0_i32, %c0_i32_0 : i32, i32, i32
  }
}

module attributes {stable_mosaic.version = 11 : i64} {
  func.func @_mbstd_scalar_kernel(%arg0: i32, %arg1: memref<2x1024xf32, #tpu.memory_space<vmem>>, %arg2: memref<1x1xf32, #tpu.memory_space<vmem>>) attributes {dimension_semantics = [#tpu.dimension_semantics<arbitrary>], iteration_bounds = array<i64: 1>, scalar_prefetch = 0 : i64, scratch_operands = 0 : i64, tpu.core_type = #tpu.core_type<tc>, window_params = [{transform_indices = @transform_0, window_bounds = array<i64: 2, 1024>}, {pipeline_mode = #tpu.pipeline_mode<synchronous>, transform_indices = @transform_1, window_bounds = array<i64: 1, 1>}]} {
    %c0_i32 = arith.constant 0 : i32
    %0 = arith.cmpi eq, %arg0, %c0_i32 : i32
    %1 = arith.extui %0 : i1 to i32
    %c0_i32_0 = arith.constant 0 : i32
    %2 = arith.cmpi ne, %1, %c0_i32_0 : i32
    scf.if %2 {
      %cst_13 = arith.constant 0.000000e+00 : f32
      %29 = vector.broadcast %cst_13 : f32 to vector<1x1xf32>
      %c0_14 = arith.constant 0 : index
      %c0_15 = arith.constant 0 : index
      %30 = vector.load %arg2[%c0_14, %c0_15] : memref<1x1xf32, #tpu.memory_space<vmem>>, vector<1x1xf32>
      tpu.vector_store %arg2[%c0_14, %c0_15], %29 {strides = array<i32>} : memref<1x1xf32, #tpu.memory_space<vmem>>, vector<1x1xf32>,
    } else {
    }
    %c0 = arith.constant 0 : index
    %c0_1 = arith.constant 0 : index
    %3 = vector.load %arg1[%c0, %c0_1] : memref<2x1024xf32, #tpu.memory_space<vmem>>, vector<2x1024xf32>
    %cst = arith.constant dense<0.000000e+00> : vector<1024xf32>
    %4 = vector.multi_reduction <add>, %3, %cst [0] : vector<2x1024xf32> to vector<1024xf32>
    %5 = vector.shape_cast %4 : vector<1024xf32> to vector<1x1024xf32>
    %cst_2 = arith.constant 2.000000e+00 : f32
    %6 = vector.broadcast %cst_2 : f32 to vector<1x1024xf32>
    %7 = arith.divf %5, %6 : vector<1x1024xf32>
    %8 = vector.broadcast %7 : vector<1x1024xf32> to vector<2x1024xf32>
    %9 = arith.subf %3, %8 : vector<2x1024xf32>
    %10 = arith.mulf %9, %9 : vector<2x1024xf32>
    %cst_3 = arith.constant dense<0.000000e+00> : vector<1024xf32>
    %11 = vector.multi_reduction <add>, %10, %cst_3 [0] : vector<2x1024xf32> to vector<1024xf32>
    %12 = vector.shape_cast %11 : vector<1024xf32> to vector<1x1024xf32>
    %cst_4 = arith.constant 2.000000e+00 : f32
    %13 = vector.broadcast %cst_4 : f32 to vector<1x1024xf32>
    %14 = arith.divf %12, %13 : vector<1x1024xf32>
    %cst_5 = arith.constant 9.99999993E-9 : f32
    %15 = vector.broadcast %cst_5 : f32 to vector<1x1024xf32>
    %16 = arith.addf %14, %15 : vector<1x1024xf32>
    %17 = math.sqrt %16 : vector<1x1024xf32>
    %c0_6 = arith.constant 0 : index
    %c0_7 = arith.constant 0 : index
    %18 = vector.load %arg2[%c0_6, %c0_7] : memref<1x1xf32, #tpu.memory_space<vmem>>, vector<1x1xf32>
    %19 = vector.shape_cast %17 : vector<1x1024xf32> to vector<1x1x1024xf32>
    %cst_8 = arith.constant dense<0.000000e+00> : vector<1xf32>
    %20 = vector.multi_reduction <add>, %19, %cst_8 [1, 2] : vector<1x1x1024xf32> to vector<1xf32>
    %21 = vector.shape_cast %20 : vector<1xf32> to vector<1x1x1xf32>
    %22 = vector.extract %21[0, 0, 0] : f32 from vector<1x1x1xf32>
    %23 = vector.broadcast %22 : f32 to vector<1x1xf32>
    %24 = arith.addf %18, %23 : vector<1x1xf32>
    %c0_9 = arith.constant 0 : index
    %c0_10 = arith.constant 0 : index
    %25 = vector.load %arg2[%c0_9, %c0_10] : memref<1x1xf32, #tpu.memory_space<vmem>>, vector<1x1xf32>
    tpu.vector_store %arg2[%c0_9, %c0_10], %24 {strides = array<i32>} : memref<1x1xf32, #tpu.memory_space<vmem>>, vector<1x1xf32>,
    %c0_i32_11 = arith.constant 0 : i32
    %26 = arith.cmpi eq, %arg0, %c0_i32_11 : i32
    %27 = arith.extui %26 : i1 to i32
    %c0_i32_12 = arith.constant 0 : i32
    %28 = arith.cmpi ne, %27, %c0_i32_12 : i32
    scf.if %28 {
      %c0_13 = arith.constant 0 : index
      %c0_14 = arith.constant 0 : index
      %29 = vector.load %arg2[%c0_13, %c0_14] : memref<1x1xf32, #tpu.memory_space<vmem>>, vector<1x1xf32>
      %cst_15 = arith.constant 9.765625E-4 : f32
      %30 = vector.broadcast %cst_15 : f32 to vector<1x1xf32>
      %31 = arith.mulf %29, %30 : vector<1x1xf32>
      %c0_16 = arith.constant 0 : index
      %c0_17 = arith.constant 0 : index
      %32 = vector.load %arg2[%c0_16, %c0_17] : memref<1x1xf32, #tpu.memory_space<vmem>>, vector<1x1xf32>
      tpu.vector_store %arg2[%c0_16, %c0_17], %31 {strides = array<i32>} : memref<1x1xf32, #tpu.memory_space<vmem>>, vector<1x1xf32>,
    } else {
    }
    return
  }
  func.func @transform_0(%arg0: i32) -> (i32, i32) {
    %c0_i32 = arith.constant 0 : i32
    %c0_i32_0 = arith.constant 0 : i32
    return %c0_i32, %arg0 : i32, i32
  }
  func.func @transform_1(%arg0: i32) -> (i32, i32) {
    %c0_i32 = arith.constant 0 : i32
    %c0_i32_0 = arith.constant 0 : i32
    %c0_i32_1 = arith.constant 0 : i32
    return %c0_i32, %c0_i32_0 : i32, i32
  }
}

</mosaic_0001>

<llo_original>
// kernel: minibatch_std_dev.3
$region0: #{minibatch_std_dev.3}
  #allocation0 [shape = 'u32[]', space=smem, size = 0x4, offset = 0x4, fixed_abs, tag = 'smem constant byte address 0x4 - core index']
  #allocation1 [shape = 'u32[144,128]{1,0:T(1,128)}', space=vmem, size = 0x12000, scoped, tag = 'internal scratch']
  #allocation2 [shape = 'f32[1,1]{1,0:T(1,128)S(6)}', space=smem, size = 0x200, scoped, tag = 'scoped memory for minibatch_std_dev.3']
  %s0 = inlined_call_operand.vmem [shape: f32[2,4,256], index: 0, kind: input, shape index: {}]
  %s1 = inlined_call_operand.<no memory space> [shape: f32[1,1], index: 1, kind: input, shape index: {}]
  %s2 = inlined_call_operand.vmem [shape: f32[2,5,256], index: 2, kind: output, shape index: {}]
  %s3 = sld [smem:[#allocation0]]
  $region41: #{minibatch_std_dev.3} parent=0
    _
  %s5 = ssub.s32 1, %s3
  %s6 = scalar_select 0, %s5, %s3
  %7 = sst [smem:[#allocation2]] %s1
  loop: start=0, step=1, limit=4
  $region2: #{minibatch_std_dev.3} parent=0 // loop_pre_header
    _
  $region3: #{minibatch_std_dev.3} parent=0 // loop_header
    %s9 = sphi 0, %s13
    %p10 = scmp.ge.s32.totalorder %s9, 4
    %s19 = sphi 0, %s21
    %s22 = sphi 0, %s19
    %s23 = sphi 0, %s22
    %s39 = sphi 0, %s23
    %s43 = sphi 0, %s43
    %s45 = sphi 0, %s43
    %s46 = sphi 0, %s45
    %s60 = sphi 0, %s46
    %s66 = sphi 0, %s68
    %s69 = sphi 0, %s66
    %s70 = sphi 0, %s69
    %s86 = sphi 0, %s70
  $region4: #{minibatch_std_dev.3} parent=0 // loop_header_branch
    %12 = sbr.rel (%p10) target = $region8
  $region5: #{minibatch_std_dev.3} parent=0 // loop_body
    %s14 = ssub.s32 %s9, 1
    %s15 = ssub.s32 %s9, 2
    %s16 = sadd.s32 %s9, 1
    %s17 = ssub.s32 %s9, %s16
    %p18 = scmp.eq.s32.totalorder %s17, 0
    %s20 = sadd.s32 %s19, 1
    %s21 = scalar_select %p18, %s19, %s20
    %p24 = pneg %p18
    %p25 = scmp.eq.s32.totalorder %s9, 1
    %p26 = por %p24, %p25
    %p27 = scmp.ne.s32.totalorder %s19, %s22
    %p28 = scmp.eq.s32.totalorder %s9, 0
    %p29 = por %p27, %p28
    %p30 = scmp.ne.s32.totalorder %s19, %s22
    %p31 = scmp.eq.s32.totalorder %s14, 1
    %p32 = por %p30, %p31
    %p33 = scmp.ne.s32.totalorder %s22, %s23
    %p34 = scmp.eq.s32.totalorder %s14, 0
    %p35 = por %p33, %p34
    %p36 = scmp.ne.s32.totalorder %s22, %s23
    %p37 = scmp.eq.s32.totalorder %s15, 1
    %p38 = por %p36, %p37
    %p40 = scmp.ne.s32.totalorder %s23, %s39
    %p41 = scmp.eq.s32.totalorder %s15, 0
    %p42 = por %p40, %p41
    %s44 = sadd.s32 %s43, 1
    %p47 = scmp.eq.s32.totalorder %s9, 1
    %p48 = scmp.ne.s32.totalorder %s43, %s45
    %p49 = scmp.eq.s32.totalorder %s9, 0
    %p50 = por %p48, %p49
    %p51 = scmp.ne.s32.totalorder %s43, %s45
    %p52 = scmp.eq.s32.totalorder %s14, 1
    %p53 = por %p51, %p52
    %p54 = scmp.ne.s32.totalorder %s45, %s46
    %p55 = scmp.eq.s32.totalorder %s14, 0
    %p56 = por %p54, %p55
    %p57 = scmp.ne.s32.totalorder %s45, %s46
    %p58 = scmp.eq.s32.totalorder %s15, 1
    %p59 = por %p57, %p58
    %p61 = scmp.ne.s32.totalorder %s46, %s60
    %p62 = scmp.eq.s32.totalorder %s15, 0
    %p63 = por %p61, %p62
    %s64 = ssub.s32 %s9, %s16
    %p65 = scmp.eq.s32.totalorder %s64, 0
    %s67 = sadd.s32 %s66, 1
    %s68 = scalar_select %p65, %s66, %s67
    %p71 = pneg %p65
    %p72 = scmp.eq.s32.totalorder %s9, 1
    %p73 = por %p71, %p72
    %p74 = scmp.ne.s32.totalorder %s66, %s69
    %p75 = scmp.eq.s32.totalorder %s9, 0
    %p76 = por %p74, %p75
    %p77 = scmp.ne.s32.totalorder %s66, %s69
    %p78 = scmp.eq.s32.totalorder %s14, 1
    %p79 = por %p77, %p78
    %p80 = scmp.ne.s32.totalorder %s69, %s70
    %p81 = scmp.eq.s32.totalorder %s14, 0
    %p82 = por %p80, %p81
    %p83 = scmp.ne.s32.totalorder %s69, %s70
    %p84 = scmp.eq.s32.totalorder %s15, 1
    %p85 = por %p83, %p84
    %p87 = scmp.ne.s32.totalorder %s70, %s86
    %p88 = scmp.eq.s32.totalorder %s15, 0
    %p89 = por %p87, %p88
    %p90 = scmp.le.s32.totalorder 1, %s9
    %p91 = scmp.lt.s32.totalorder %s9, 3
    %p92 = pnand %p90, %p91
    %p93 = pneg %p92
    // Predicated region
    $region9: #{minibatch_std_dev.3} parent=5 // pred_check
      _
    $region10: #{minibatch_std_dev.3} parent=5 // pred_check_branch
      %95 = sbr.rel (%p92) target = $region12
    $region11: #{minibatch_std_dev.3} parent=5 // pred_region
      %s96 = ssub.s32 %s9, 1
      // Predicated region
      $region13: #{minibatch_std_dev.3} parent=11 // pred_check
        %p97 = pneg %p56
      $region14: #{minibatch_std_dev.3} parent=11 // pred_check_branch
        %99 = sbr.rel (%p97) target = $region16
      $region15: #{minibatch_std_dev.3} parent=11 // pred_region
        _
      $region16: #{minibatch_std_dev.3} parent=11 // pred_fallthru
        _
    $region12: #{minibatch_std_dev.3} parent=5 // pred_fallthru
      _
    %p100 = scmp.lt.s32.totalorder %s9, 2
    // Predicated region
    $region17: #{minibatch_std_dev.3} parent=5 // pred_check
      %p101 = pneg %p100
    $region18: #{minibatch_std_dev.3} parent=5 // pred_check_branch
      %103 = sbr.rel (%p101) target = $region20
    $region19: #{minibatch_std_dev.3} parent=5 // pred_region
      // Predicated region
      $region21: #{minibatch_std_dev.3} parent=19 // pred_check
        %p104 = pneg %p29
      $region22: #{minibatch_std_dev.3} parent=19 // pred_check_branch
        %106 = sbr.rel (%p104) target = $region24
      $region23: #{minibatch_std_dev.3} parent=19 // pred_region
        %p107 = scmp.lt.s32.totalorder %s9, 1
        %s108 = scalar_select %p107, %s9, 1
        %s109 = smul.addr %s108, 2
        %s110 = smul.addr %s109, 4
        %s111 = scalar_lea.vmem %s0, %s110
      $region24: #{minibatch_std_dev.3} parent=19 // pred_fallthru
        _
    $region20: #{minibatch_std_dev.3} parent=5 // pred_fallthru
      _
    %p112 = scmp.le.s32.totalorder 1, %s9
    %p113 = scmp.lt.s32.totalorder %s9, 3
    %p114 = pnand %p112, %p113
    %p115 = pneg %p114
    // Predicated region
    $region25: #{minibatch_std_dev.3} parent=5 // pred_check
      _
    $region26: #{minibatch_std_dev.3} parent=5 // pred_check_branch
      %117 = sbr.rel (%p114) target = $region28
    $region27: #{minibatch_std_dev.3} parent=5 // pred_region
      %s118 = ssub.s32 %s9, 1
      %p119 = scmp.lt.s32.totalorder %s14, 1
      %s120 = scalar_select %p119, %s14, 1
      %s121 = smul.addr %s120, 2
      %s122 = smul.addr %s121, 4
      %s123 = scalar_lea.vmem %s0, %s122
      %p124 = pneg %p35
      %p125 = pneg %p32
      %p126 = pneg %p56
      %p127 = pneg %p53
      %p128 = pneg %p82
      %p129 = pneg %p79
      %p130 = scmp.lt.s32.totalorder %s14, 1
      %s131 = scalar_select %p130, %s14, 1
      %s132 = smul.addr %s131, 2
      %s133 = smul.addr %s132, 8
      %s134 = scalar_lea.vmem %s2, %s133
      %p135 = scmp.lt.s32.totalorder %s14, 1
      %s136 = scalar_select %p135, %s14, 1
      %s137 = smul.addr %s136, 2
      %s138 = smul.addr %s137, 4
      %s139 = scalar_lea.vmem %s0, %s138
      %p140 = scmp.lt.s32.totalorder %s14, 1
      %s141 = scalar_select %p140, %s14, 1
      %s142 = smul.addr %s141, 2
      %s143 = smul.addr %s142, 8
      %s144 = scalar_lea.vmem %s2, %s143
      %s145 = sld [smem:[#allocation2]]
      %v146 = vld [vmem:[%s139] sm:$0xff]
      %v148 = vcombine.high %v146, %v146
      %150 = vst [vmem:[%s144] sm:$0xf] %v146
      %151 = vst [vmem:[%s144 + $0x8] sm:$0xf] %v148
      %v152 = vstv %s145
      %v153 = vlaneseq
      %vm154 = vcmp.ge.s32.totalorder %v153, 0
      %vm155 = vcmp.lt.s32.totalorder %v153, 256
      %vm156 = vmand %vm154, %vm155
      %s157 = scalar_lea.vmem %s144, 4
      %158 = vst.msk [vmem:[%s157] ss:$8 sm:$0x3] %vm156, %v152
      %159 = vst.msk [vmem:[%s157] ss:$8 sm:$0x0] %vm156, %v152
      %p160 = scmp.lt.s32.totalorder %s14, 1
      %s161 = scalar_select %p160, %s14, 1
      %s162 = smul.addr %s161, 2
      %s163 = smul.addr %s162, 8
      %s164 = scalar_lea.vmem %s2, %s163
      // Predicated region
      $region29: #{minibatch_std_dev.3} parent=27 // pred_check
        %p165 = pneg %p79
      $region30: #{minibatch_std_dev.3} parent=27 // pred_check_branch
        %167 = sbr.rel (%p165) target = $region32
      $region31: #{minibatch_std_dev.3} parent=27 // pred_region
        _
      $region32: #{minibatch_std_dev.3} parent=27 // pred_fallthru
        _
    $region28: #{minibatch_std_dev.3} parent=5 // pred_fallthru
      _
    %p168 = scmp.le.s32.totalorder 2, %s9
    // Predicated region
    $region33: #{minibatch_std_dev.3} parent=5 // pred_check
      %p169 = pneg %p168
    $region34: #{minibatch_std_dev.3} parent=5 // pred_check_branch
      %171 = sbr.rel (%p169) target = $region36
    $region35: #{minibatch_std_dev.3} parent=5 // pred_region
      %s172 = ssub.s32 %s9, 2
      // Predicated region
      $region37: #{minibatch_std_dev.3} parent=35 // pred_check
        %p173 = pneg %p85
      $region38: #{minibatch_std_dev.3} parent=35 // pred_check_branch
        %175 = sbr.rel (%p173) target = $region40
      $region39: #{minibatch_std_dev.3} parent=35 // pred_region
        %p176 = scmp.lt.s32.totalorder %s15, 1
        %s177 = scalar_select %p176, %s15, 1
        %s178 = smul.addr %s177, 2
        %s179 = smul.addr %s178, 8
        %s180 = scalar_lea.vmem %s2, %s179
      $region40: #{minibatch_std_dev.3} parent=35 // pred_fallthru
        _
    $region36: #{minibatch_std_dev.3} parent=5 // pred_fallthru
      _
  $region6: #{minibatch_std_dev.3} parent=0 // loop_footer
    %s13 = sadd.s32 1, %s9
  $region7: #{minibatch_std_dev.3} parent=0 // loop_footer_branch
    %8 = sbr.rel target = $region3
  $region8: #{minibatch_std_dev.3} parent=0 // loop_exit
    _

// kernel: minibatch_std_dev.2
$region0: #{minibatch_std_dev.2}
  #allocation0 [shape = 'u32[]', space=smem, size = 0x4, offset = 0x4, fixed_abs, tag = 'smem constant byte address 0x4 - core index']
  #allocation1 [shape = 'u32[144,128]{1,0:T(1,128)}', space=vmem, size = 0x12000, scoped, tag = 'internal scratch']
  %s0 = inlined_call_operand.vmem [shape: f32[2,1024], index: 0, kind: input, shape index: {}]
  %s1 = inlined_call_operand.hbm [shape: f32[1,1], index: 1, kind: output, shape index: {}]
  %s2 = sld [smem:[#allocation0]]
  $region22: #{minibatch_std_dev.2} parent=0
    _
  %s4 = ssub.s32 1, %s2
  %s5 = scalar_select 0, %s4, %s2
  $region1: #{minibatch_std_dev.2} parent=0
    #allocation2 [shape = 'u8[512]{0}', space=vmem, size = 0x400, scoped, tag = 'output window, operand 0, single buffered']
    #allocation3 [shape = 's32[1]{0}', space=sflag, size = 0x4, scoped, tag = 'scoped memory for minibatch_std_dev.2']
    %6 = vsyncpa [#allocation3], 0
    // Predicated region
    $region2: #{minibatch_std_dev.2} parent=1 // pred_check
      _
    $region3: #{minibatch_std_dev.2} parent=1 // pred_check_branch
      %8 = sbr.rel (0) target = $region5
    $region4: #{minibatch_std_dev.2} parent=1 // pred_region
      _
    $region5: #{minibatch_std_dev.2} parent=1 // pred_fallthru
      _
    %p9 = scmp.eq.s32.totalorder 0, 0
    // Predicated region
    $region6: #{minibatch_std_dev.2} parent=1 // pred_check
      %p10 = pneg %p9
    $region7: #{minibatch_std_dev.2} parent=1 // pred_check_branch
      %12 = sbr.rel (%p10) target = $region9
    $region8: #{minibatch_std_dev.2} parent=1 // pred_region
      %vm13 = vcmask 0
      %14 = vst.msk [vmem:[#allocation2] sm:$0x1] %vm13, 0.0
    $region9: #{minibatch_std_dev.2} parent=1 // pred_fallthru
      _
    %v15 = vld [vmem:[%s0] sm:$0xff]
    %v16 = vld [vmem:[%s0 + $0x8] sm:$0xff]
    %v19 = vcombine.high %v15, %v15
    %v21 = vunpack.c.l.s4 1983009808
    %v22 = vunpack.c.0.s8 %v21
    %v23 = vlaneseq
    %v24 = vshrl.u32 %v23, 7
    %v25 = vsub.s32 %v22, %v24
    %v26 = vrot.slane %v15, %v25
    %v28 = vunpack.c.l.s4 1983009808
    %v29 = vunpack.c.0.s8 %v28
    %v30 = vlaneseq
    %v31 = vshrl.u32 %v30, 7
    %v32 = vsub.s32 %v29, %v31
    %v33 = vrot.slane %v19, %v32
    %v34 = vcombine.high %v26, %v26
    %v35 = vcombine.high %v33, %v33
    %v36 = vcombine.high %v16, %v16
    %v38 = vunpack.c.l.s4 1983009808
    %v39 = vunpack.c.0.s8 %v38
    %v40 = vlaneseq
    %v41 = vshrl.u32 %v40, 7
    %v42 = vsub.s32 %v39, %v41
    %v43 = vrot.slane %v16, %v42
    %v45 = vunpack.c.l.s4 1983009808
    %v46 = vunpack.c.0.s8 %v45
    %v47 = vlaneseq
    %v48 = vshrl.u32 %v47, 7
    %v49 = vsub.s32 %v46, %v48
    %v50 = vrot.slane %v36, %v49
    %v51 = vcombine.high %v43, %v43
    %v52 = vcombine.high %v50, %v50
    %vm61 = vcmask 1041408
    %v62 = vsel %vm61, %v26, 0.0
    %v63 = vrot.slane %v62, 4
    %v64 = vadd.f32 %v62, %v63
    %v65 = vrot.slane %v64, 2
    %v66 = vadd.f32 %v64, %v65
    %v67 = vrot.slane %v66, 1
    %v68 = vadd.f32 %v66, %v67
    %v69 = vsel %vm61, %v34, 0.0
    %v70 = vrot.slane %v69, 4
    %v71 = vadd.f32 %v69, %v70
    %v72 = vrot.slane %v71, 2
    %v73 = vadd.f32 %v71, %v72
    %v74 = vrot.slane %v73, 1
    %v75 = vadd.f32 %v73, %v74
    %v76 = vsel %vm61, %v33, 0.0
    %v77 = vrot.slane %v76, 4
    %v78 = vadd.f32 %v76, %v77
    %v79 = vrot.slane %v78, 2
    %v80 = vadd.f32 %v78, %v79
    %v81 = vrot.slane %v80, 1
    %v82 = vadd.f32 %v80, %v81
    %v83 = vsel %vm61, %v35, 0.0
    %v84 = vrot.slane %v83, 4
    %v85 = vadd.f32 %v83, %v84
    %v86 = vrot.slane %v85, 2
    %v87 = vadd.f32 %v85, %v86
    %v88 = vrot.slane %v87, 1
    %v89 = vadd.f32 %v87, %v88
    %v90 = vsel %vm61, %v43, 0.0
    %v91 = vrot.slane %v90, 4
    %v92 = vadd.f32 %v90, %v91
    %v93 = vrot.slane %v92, 2
    %v94 = vadd.f32 %v92, %v93
    %v95 = vrot.slane %v94, 1
    %v96 = vadd.f32 %v94, %v95
    %v97 = vsel %vm61, %v51, 0.0
    %v98 = vrot.slane %v97, 4
    %v99 = vadd.f32 %v97, %v98
    %v100 = vrot.slane %v99, 2
    %v101 = vadd.f32 %v99, %v100
    %v102 = vrot.slane %v101, 1
    %v103 = vadd.f32 %v101, %v102
    %v104 = vsel %vm61, %v50, 0.0
    %v105 = vrot.slane %v104, 4
    %v106 = vadd.f32 %v104, %v105
    %v107 = vrot.slane %v106, 2
    %v108 = vadd.f32 %v106, %v107
    %v109 = vrot.slane %v108, 1
    %v110 = vadd.f32 %v108, %v109
    %v111 = vsel %vm61, %v52, 0.0
    %v112 = vrot.slane %v111, 4
    %v113 = vadd.f32 %v111, %v112
    %v114 = vrot.slane %v113, 2
    %v115 = vadd.f32 %v113, %v114
    %v116 = vrot.slane %v115, 1
    %v117 = vadd.f32 %v115, %v116
    %v118 = vrcp.pop 2.0
    %v119 = vmul.f32 %v68, %v118
    %v120 = vmul.f32 %v75, %v118
    %v121 = vmul.f32 %v82, %v118
    %v122 = vmul.f32 %v89, %v118
    %v123 = vmul.f32 %v96, %v118
    %v124 = vmul.f32 %v103, %v118
    %v125 = vmul.f32 %v110, %v118
    %v126 = vmul.f32 %v117, %v118
    %v135 = vcombine.low %v119, %v120
    %v136 = vcombine.low %v121, %v122
    %v138 = vunpack.c.l.s4 1983009808
    %v139 = vunpack.c.0.s8 %v138
    %v140 = vlaneseq
    %v141 = vshrl.u32 %v140, 7
    %v142 = vsub.s32 %v139, %v141
    %v143 = vrot.slane %v135, %v142
    %v145 = vunpack.c.l.s4 1983009808
    %v146 = vunpack.c.0.s8 %v145
    %v147 = vlaneseq
    %v148 = vshrl.u32 %v147, 7
    %v149 = vsub.s32 %v146, %v148
    %v150 = vrot.slane %v136, %v149
    %v151 = vcombine.low %v143, %v150
    %v152 = vcombine.low %v123, %v124
    %v153 = vcombine.low %v125, %v126
    %v155 = vunpack.c.l.s4 1983009808
    %v156 = vunpack.c.0.s8 %v155
    %v157 = vlaneseq
    %v158 = vshrl.u32 %v157, 7
    %v159 = vsub.s32 %v156, %v158
    %v160 = vrot.slane %v152, %v159
    %v162 = vunpack.c.l.s4 1983009808
    %v163 = vunpack.c.0.s8 %v162
    %v164 = vlaneseq
    %v165 = vshrl.u32 %v164, 7
    %v166 = vsub.s32 %v163, %v165
    %v167 = vrot.slane %v153, %v166
    %v168 = vcombine.low %v160, %v167
    %v171 = vsub.f32 %v15, %v151
    %v172 = vsub.f32 %v16, %v168
    %v173 = vmul.f32 %v171, %v171
    %v174 = vmul.f32 %v172, %v172
    %v177 = vcombine.high %v173, %v173
    %v179 = vunpack.c.l.s4 1983009808
    %v180 = vunpack.c.0.s8 %v179
    %v181 = vlaneseq
    %v182 = vshrl.u32 %v181, 7
    %v183 = vsub.s32 %v180, %v182
    %v184 = vrot.slane %v173, %v183
    %v186 = vunpack.c.l.s4 1983009808
    %v187 = vunpack.c.0.s8 %v186
    %v188 = vlaneseq
    %v189 = vshrl.u32 %v188, 7
    %v190 = vsub.s32 %v187, %v189
    %v191 = vrot.slane %v177, %v190
    %v192 = vcombine.high %v184, %v184
    %v193 = vcombine.high %v191, %v191
    %v194 = vcombine.high %v174, %v174
    %v196 = vunpack.c.l.s4 1983009808
    %v197 = vunpack.c.0.s8 %v196
    %v198 = vlaneseq
    %v199 = vshrl.u32 %v198, 7
    %v200 = vsub.s32 %v197, %v199
    %v201 = vrot.slane %v174, %v200
    %v203 = vunpack.c.l.s4 1983009808
    %v204 = vunpack.c.0.s8 %v203
    %v205 = vlaneseq
    %v206 = vshrl.u32 %v205, 7
    %v207 = vsub.s32 %v204, %v206
    %v208 = vrot.slane %v194, %v207
    %v209 = vcombine.high %v201, %v201
    %v210 = vcombine.high %v208, %v208
    %v219 = vsel %vm61, %v184, 0.0
    %v220 = vrot.slane %v219, 4
    %v221 = vadd.f32 %v219, %v220
    %v222 = vrot.slane %v221, 2
    %v223 = vadd.f32 %v221, %v222
    %v224 = vrot.slane %v223, 1
    %v225 = vadd.f32 %v223, %v224
    %v226 = vsel %vm61, %v192, 0.0
    %v227 = vrot.slane %v226, 4
    %v228 = vadd.f32 %v226, %v227
    %v229 = vrot.slane %v228, 2
    %v230 = vadd.f32 %v228, %v229
    %v231 = vrot.slane %v230, 1
    %v232 = vadd.f32 %v230, %v231
    %v233 = vsel %vm61, %v191, 0.0
    %v234 = vrot.slane %v233, 4
    %v235 = vadd.f32 %v233, %v234
    %v236 = vrot.slane %v235, 2
    %v237 = vadd.f32 %v235, %v236
    %v238 = vrot.slane %v237, 1
    %v239 = vadd.f32 %v237, %v238
    %v240 = vsel %vm61, %v193, 0.0
    %v241 = vrot.slane %v240, 4
    %v242 = vadd.f32 %v240, %v241
    %v243 = vrot.slane %v242, 2
    %v244 = vadd.f32 %v242, %v243
    %v245 = vrot.slane %v244, 1
    %v246 = vadd.f32 %v244, %v245
    %v247 = vsel %vm61, %v201, 0.0
    %v248 = vrot.slane %v247, 4
    %v249 = vadd.f32 %v247, %v248
    %v250 = vrot.slane %v249, 2
    %v251 = vadd.f32 %v249, %v250
    %v252 = vrot.slane %v251, 1
    %v253 = vadd.f32 %v251, %v252
    %v254 = vsel %vm61, %v209, 0.0
    %v255 = vrot.slane %v254, 4
    %v256 = vadd.f32 %v254, %v255
    %v257 = vrot.slane %v256, 2
    %v258 = vadd.f32 %v256, %v257
    %v259 = vrot.slane %v258, 1
    %v260 = vadd.f32 %v258, %v259
    %v261 = vsel %vm61, %v208, 0.0
    %v262 = vrot.slane %v261, 4
    %v263 = vadd.f32 %v261, %v262
    %v264 = vrot.slane %v263, 2
    %v265 = vadd.f32 %v263, %v264
    %v266 = vrot.slane %v265, 1
    %v267 = vadd.f32 %v265, %v266
    %v268 = vsel %vm61, %v210, 0.0
    %v269 = vrot.slane %v268, 4
    %v270 = vadd.f32 %v268, %v269
    %v271 = vrot.slane %v270, 2
    %v272 = vadd.f32 %v270, %v271
    %v273 = vrot.slane %v272, 1
    %v274 = vadd.f32 %v272, %v273
    %v275 = vmul.f32 %v225, %v118
    %v276 = vmul.f32 %v232, %v118
    %v277 = vmul.f32 %v239, %v118
    %v278 = vmul.f32 %v246, %v118
    %v279 = vmul.f32 %v253, %v118
    %v280 = vmul.f32 %v260, %v118
    %v281 = vmul.f32 %v267, %v118
    %v282 = vmul.f32 %v274, %v118
    %v283 = vadd.f32 %v275, 1e-08
    %v284 = vadd.f32 %v276, 1e-08
    %v285 = vadd.f32 %v277, 1e-08
    %v286 = vadd.f32 %v278, 1e-08
    %v287 = vadd.f32 %v279, 1e-08
    %v288 = vadd.f32 %v280, 1e-08
    %v289 = vadd.f32 %v281, 1e-08
    %v290 = vadd.f32 %v282, 1e-08
    %v291 = vrsqrt.pop %v283
    %v292 = vmul.f32 %v283, %v291
    %vm293 = vcmp.eq.f32.partialorder %v283, inf
    %v294 = vsel %vm293, %v283, %v292
    %vm295 = vcmp.eq.f32.partialorder %v283, 0.0
    %v296 = vand.u32 %v283, 2147483648
    %v297 = vsel %vm295, %v296, %v294
    %v298 = vrsqrt.pop %v284
    %v299 = vmul.f32 %v284, %v298
    %vm300 = vcmp.eq.f32.partialorder %v284, inf
    %v301 = vsel %vm300, %v284, %v299
    %vm302 = vcmp.eq.f32.partialorder %v284, 0.0
    %v303 = vand.u32 %v284, 2147483648
    %v304 = vsel %vm302, %v303, %v301
    %v305 = vrsqrt.pop %v285
    %v306 = vmul.f32 %v285, %v305
    %vm307 = vcmp.eq.f32.partialorder %v285, inf
    %v308 = vsel %vm307, %v285, %v306
    %vm309 = vcmp.eq.f32.partialorder %v285, 0.0
    %v310 = vand.u32 %v285, 2147483648
    %v311 = vsel %vm309, %v310, %v308
    %v312 = vrsqrt.pop %v286
    %v313 = vmul.f32 %v286, %v312
    %vm314 = vcmp.eq.f32.partialorder %v286, inf
    %v315 = vsel %vm314, %v286, %v313
    %vm316 = vcmp.eq.f32.partialorder %v286, 0.0
    %v317 = vand.u32 %v286, 2147483648
    %v318 = vsel %vm316, %v317, %v315
    %v319 = vrsqrt.pop %v287
    %v320 = vmul.f32 %v287, %v319
    %vm321 = vcmp.eq.f32.partialorder %v287, inf
    %v322 = vsel %vm321, %v287, %v320
    %vm323 = vcmp.eq.f32.partialorder %v287, 0.0
    %v324 = vand.u32 %v287, 2147483648
    %v325 = vsel %vm323, %v324, %v322
    %v326 = vrsqrt.pop %v288
    %v327 = vmul.f32 %v288, %v326
    %vm328 = vcmp.eq.f32.partialorder %v288, inf
    %v329 = vsel %vm328, %v288, %v327
    %vm330 = vcmp.eq.f32.partialorder %v288, 0.0
    %v331 = vand.u32 %v288, 2147483648
    %v332 = vsel %vm330, %v331, %v329
    %v333 = vrsqrt.pop %v289
    %v334 = vmul.f32 %v289, %v333
    %vm335 = vcmp.eq.f32.partialorder %v289, inf
    %v336 = vsel %vm335, %v289, %v334
    %vm337 = vcmp.eq.f32.partialorder %v289, 0.0
    %v338 = vand.u32 %v289, 2147483648
    %v339 = vsel %vm337, %v338, %v336
    %v340 = vrsqrt.pop %v290
    %v341 = vmul.f32 %v290, %v340
    %vm342 = vcmp.eq.f32.partialorder %v290, inf
    %v343 = vsel %vm342, %v290, %v341
    %vm344 = vcmp.eq.f32.partialorder %v290, 0.0
    %v345 = vand.u32 %v290, 2147483648
    %v346 = vsel %vm344, %v345, %v343
    %v347 = vld [vmem:[#allocation2] sm:$0x1]
    %vm348 = vcmask 1040384
    %v349 = vsel %vm348, %v297, 0.0
    %v350 = vsel %vm348, %v304, 0.0
    %v351 = vadd.f32 %v349, %v350
    %v352 = vsel %vm348, %v311, 0.0
    %v353 = vadd.f32 %v351, %v352
    %v354 = vsel %vm348, %v318, 0.0
    %v355 = vadd.f32 %v353, %v354
    %v356 = vsel %vm348, %v325, 0.0
    %v357 = vadd.f32 %v355, %v356
    %v358 = vsel %vm348, %v332, 0.0
    %v359 = vadd.f32 %v357, %v358
    %v360 = vsel %vm348, %v339, 0.0
    %v361 = vadd.f32 %v359, %v360
    %v362 = vsel %vm348, %v346, 0.0
    %v363 = vadd.f32 %v361, %v362
    %364 = vadd.xlane.f32.xlu0 %v363
    %v365 = vpop.xlane.xlu0 %364
    %v366 = vrot.slane %v365, 4
    %v367 = vadd.f32 %v365, %v366
    %v368 = vrot.slane %v367, 2
    %v369 = vadd.f32 %v367, %v368
    %v370 = vrot.slane %v369, 1
    %v371 = vadd.f32 %v369, %v370
    %s372 = vtos %v371
    %v373 = vstv %s372
    %v374 = vadd.f32 %v347, %v373
    %vm375 = vcmask 0
    %376 = vst.msk [vmem:[#allocation2] sm:$0x1] %vm375, %v374
    // Predicated region
    $region10: #{minibatch_std_dev.2} parent=1 // pred_check
      %p377 = pneg %p9
    $region11: #{minibatch_std_dev.2} parent=1 // pred_check_branch
      %379 = sbr.rel (%p377) target = $region13
    $region12: #{minibatch_std_dev.2} parent=1 // pred_region
      %v380 = vld [vmem:[#allocation2] sm:$0x1]
      %v381 = vmul.f32 %v380, 0.0009765625
      %382 = vst.msk [vmem:[#allocation2] sm:$0x1] %vm375, %v381
    $region13: #{minibatch_std_dev.2} parent=1 // pred_fallthru
      _
    // Predicated region
    $region14: #{minibatch_std_dev.2} parent=1 // pred_check
      _
    $region15: #{minibatch_std_dev.2} parent=1 // pred_check_branch
      %384 = sbr.rel (0) target = $region17
    $region16: #{minibatch_std_dev.2} parent=1 // pred_region
      %s386 = ssub.s32 16, 16
      %387 = vsyncadd [#allocation3], %s386
      %s389 = sshll.u32 [#allocation2], 4
      %s390 = int_to_ptr.vmem [resolvable:$true] %s389
      %392 = dma.vmem_to_hbm [thread:$0]  %s390, 16, %s1, [#allocation3]
    $region17: #{minibatch_std_dev.2} parent=1 // pred_fallthru
      _
    // Predicated region
    $region18: #{minibatch_std_dev.2} parent=1 // pred_check
      _
    $region19: #{minibatch_std_dev.2} parent=1 // pred_check_branch
      %394 = sbr.rel (0) target = $region21
    $region20: #{minibatch_std_dev.2} parent=1 // pred_region
      %395 = dma.done [#allocation3], 16
    $region21: #{minibatch_std_dev.2} parent=1 // pred_fallthru
      _
    %396 = vsyncpa [#allocation3], 1

</llo_original>
